<compile_context>
chip_gen: v6e
topology: v6e:2x2x1
jax: 0.10.0
libtpu: 0.0.40
codegen_flags: <defaults>
</compile_context>

<pallas_src>
import jax
import jax.numpy as jnp
from jax import lax
from jax.experimental import pallas as pl
from jax.experimental.pallas import tpu as pltpu


def _pick_tile(n, preferred=256):
    """Largest multiple-of-8 tile <= `preferred` that divides n, else n (full)."""
    if n <= preferred:
        return n
    for t in range(preferred, 7, -8):
        if n % t == 0:
            return t
    # TODO(synk): for seq with no nice divisor, pad seq and mask padded keys
    # with -inf instead of taking one giant un-pipelined block.
    return n


# ---------------------------------------------------------------------------
# Projection kernel: qkv_tile = x_tile @ [Wq*scale | Wk | Wv]  (one MXU matmul)
# ---------------------------------------------------------------------------
def _qkv_proj_kernel(x_ref, w_ref, qkv_ref):
    qkv_ref[...] = jnp.dot(
        x_ref[...], w_ref[...], preferred_element_type=jnp.float32
    ).astype(qkv_ref.dtype)


# ---------------------------------------------------------------------------
# Flash attention kernel (online softmax), grid = (q_blocks, kv_blocks).
# ---------------------------------------------------------------------------
def _flash_attn_kernel(q_ref, k_ref, v_ref, o_ref, m_sc, l_sc, acc_sc):
    ki = pl.program_id(1)

    @pl.when(ki == 0)
    def _init():
        m_sc[...] = jnp.full_like(m_sc, -jnp.inf)
        l_sc[...] = jnp.zeros_like(l_sc)
        acc_sc[...] = jnp.zeros_like(acc_sc)

    # Scores for this (q tile, kv tile): contract feature dims of q and k
    # directly (no k.T materialization).  The 1/sqrt(d_out) scale is already
    # folded into W_query, so q arrives pre-scaled.
    s = lax.dot_general(q_ref[...], k_ref[...], (((1,), (1,)), ((), ())),
                        preferred_element_type=jnp.float32)   # [tq, tk] f32

    # Online (flash) softmax update; all bookkeeping kept in f32.
    m_prev = m_sc[...]
    m_new = jnp.maximum(m_prev, jnp.max(s, axis=-1, keepdims=True))
    alpha = jnp.exp(m_prev - m_new)
    p = jnp.exp(s - m_new)
    l_sc[...] = alpha * l_sc[...] + jnp.sum(p, axis=-1, keepdims=True)
    acc_sc[...] = alpha * acc_sc[...] + jnp.dot(
        p.astype(v_ref.dtype), v_ref[...], preferred_element_type=jnp.float32)
    m_sc[...] = m_new

    @pl.when(ki == pl.num_programs(1) - 1)
    def _finalize():
        # Exact reciprocal (approx=True was the source of the previous
        # correctness failure; the exact path is one op per query row).
        inv_l = pl.reciprocal(l_sc[...], approx=False)
        o_ref[...] = (acc_sc[...] * inv_l).astype(o_ref.dtype)


# ---------------------------------------------------------------------------
# One-time weight prep (hoisted out of the per-call hot path).
# ---------------------------------------------------------------------------
def pack_qkv_weights(w_query, w_key, w_value):
    """Fold softmax scale into Wq, zero-pad d_out to a multiple of 128 lanes,
    pack as [Wq*scale | Wk | Wv] -> (d_in, 3*d_pad).  Returns (w_qkv, d_out, d_pad)."""
    d_in, d_out = w_query.shape
    scale = 1.0 / (d_out ** 0.5)              # matches keys.shape[-1] ** 0.5
    d_pad = max(128, ((d_out + 127) // 128) * 128)
    pad = d_pad - d_out
    wq = jnp.pad(w_query * scale, ((0, 0), (0, pad)))
    wk = jnp.pad(w_key, ((0, 0), (0, pad)))
    wv = jnp.pad(w_value, ((0, 0), (0, pad)))
    return jnp.concatenate([wq, wk, wv], axis=1), d_out, d_pad


def self_attention_v1(x, w_qkv, d_out, d_pad, *, matmul_dtype=None,
                      q_tile=256, kv_tile=256):
    """x: [seq, d_in]; w_qkv: packed/padded [d_in, 3*d_pad] -> [seq, d_out]."""
    seq, d_in = x.shape
    out_dtype = x.dtype

    # Optional bf16 MXU operands (f32 accumulation) -- big win on v6e/v7x.
    if matmul_dtype is not None:
        x = x.astype(matmul_dtype)
        w_qkv = w_qkv.astype(matmul_dtype)
    qkv_dtype = x.dtype

    vmem_limit = 32 * 1024 * 1024  # > v5e's 16 MiB default, within v7x's 64 MiB

    # --- Projection (hoisted): qkv = x @ [Wq*scale | Wk | Wv], once per tile.
    tp = _pick_tile(seq, q_tile)
    qkv = pl.pallas_call(
        _qkv_proj_kernel,
        out_shape=jax.ShapeDtypeStruct((seq, 3 * d_pad), qkv_dtype),
        grid_spec=pltpu.PrefetchScalarGridSpec(
            num_scalar_prefetch=0,
            grid=(seq // tp,),
            in_specs=[
                pl.BlockSpec((tp, d_in), lambda i: (i, 0)),
                pl.BlockSpec((d_in, 3 * d_pad), lambda i: (0, 0)),
            ],
            out_specs=pl.BlockSpec((tp, 3 * d_pad), lambda i: (i, 0))),
        compiler_params=pltpu.CompilerParams(
            dimension_semantics=("parallel",),
            vmem_limit_bytes=vmem_limit),
    )(x, w_qkv)

    # --- Flash attention over (q blocks, kv blocks); KV (reduction) axis last.
    tq = _pick_tile(seq, q_tile)
    tk = _pick_tile(seq, kv_tile)
    n_q = seq // tq
    n_k = seq // tk

    out_padded = pl.pallas_call(
        _flash_attn_kernel,
        out_shape=jax.ShapeDtypeStruct((seq, d_pad), out_dtype),
        grid_spec=pltpu.PrefetchScalarGridSpec(
            num_scalar_prefetch=0,
            grid=(n_q, n_k),
            in_specs=[
                # qkv is passed three times; column-block index selects Q/K/V.
                pl.BlockSpec((tq, d_pad), lambda qi, ki: (qi, 0)),  # Q
                pl.BlockSpec((tk, d_pad), lambda qi, ki: (ki, 1)),  # K
                pl.BlockSpec((tk, d_pad), lambda qi, ki: (ki, 2)),  # V
            ],
            out_specs=pl.BlockSpec((tq, d_pad), lambda qi, ki: (qi, 0)),
            scratch_shapes=[
                pltpu.VMEM((tq, 1), jnp.float32),      # running max
                pltpu.VMEM((tq, 1), jnp.float32),      # running denom
                pltpu.VMEM((tq, d_pad), jnp.float32),  # running numerator
            ]),
        compiler_params=pltpu.CompilerParams(
            dimension_semantics=("parallel", "arbitrary"),
            vmem_limit_bytes=vmem_limit),
    )(qkv, qkv, qkv)

    return out_padded[:, :d_out]


def reference_self_attention(x, w_query, w_key, w_value):
    hp = lax.Precision.HIGHEST
    keys = jnp.dot(x, w_key, precision=hp)
    values = jnp.dot(x, w_value, precision=hp)
    query = jnp.dot(x, w_query, precision=hp)
    scores = jnp.dot(query, keys.T, precision=hp)
    weights = jax.nn.softmax(scores / (keys.shape[-1] ** 0.5), axis=-1)
    return jnp.dot(weights, values, precision=hp)


if __name__ == "__main__":
    key = jax.random.PRNGKey(0)
    k_x, k_q, k_k, k_v = jax.random.split(key, 4)

    seq, d_in, d_out = 8, 32, 32  # small shapes consistent with the module

    x = jax.random.normal(k_x, (seq, d_in), dtype=jnp.float32)
    # torch.rand -> uniform [0, 1)
    w_query = jax.random.uniform(k_q, (d_in, d_out), dtype=jnp.float32)
    w_key = jax.random.uniform(k_k, (d_in, d_out), dtype=jnp.float32)
    w_value = jax.random.uniform(k_v, (d_in, d_out), dtype=jnp.float32)

    # One-time weight packing (would be cached alongside the params in real use).
    w_qkv, d_out_, d_pad = pack_qkv_weights(w_query, w_key, w_value)

    out = self_attention_v1(x, w_qkv, d_out_, d_pad)   # f32 path for the check
    out = jax.block_until_ready(out)

    ref = reference_self_attention(x, w_query, w_key, w_value)
    assert out.shape == ref.shape
    # Exact reciprocal + f32 matmuls: only online-softmax reassociation error remains.
    assert jnp.allclose(out, ref, atol=5e-3, rtol=5e-3), "mismatch vs reference"

    print("KERNEL_OK")
</pallas_src>

<mosaic_0001>
module attributes {stable_mosaic.version = 11 : i64} {
  func.func @_qkv_proj_kernel(%arg0: i32, %arg1: memref<8x32xf32, #tpu.memory_space<vmem>>, %arg2: memref<32x384xf32, #tpu.memory_space<vmem>>, %arg3: memref<8x384xf32, #tpu.memory_space<vmem>>) attributes {dimension_semantics = [#tpu.dimension_semantics<parallel>], iteration_bounds = array<i64: 1>, scalar_prefetch = 0 : i64, scratch_operands = 0 : i64, tpu.core_type = #tpu.core_type<tc>, window_params = [{transform_indices = @transform_0, window_bounds = array<i64: 8, 32>}, {pipeline_mode = #tpu.pipeline_mode<synchronous>, transform_indices = @transform_1, window_bounds = array<i64: 32, 384>}, {transform_indices = @transform_2, window_bounds = array<i64: 8, 384>}]} {
    %c0 = arith.constant 0 : index
    %c0_0 = arith.constant 0 : index
    %0 = vector.load %arg1[%c0, %c0_0] : memref<8x32xf32, #tpu.memory_space<vmem>>, vector<8x32xf32>
    %c0_1 = arith.constant 0 : index
    %c0_2 = arith.constant 0 : index
    %1 = vector.load %arg2[%c0_1, %c0_2] : memref<32x384xf32, #tpu.memory_space<vmem>>, vector<32x384xf32>
    %cst = arith.constant dense<0.000000e+00> : vector<8x384xf32>
    %2 = tpu.matmul %0, %1, %cst {dimension_numbers = #tpu.dot_dimension_numbers<[1], [0], [0], [1], [0, 0, 1, 1], [], []>} : vector<8x32xf32>, vector<32x384xf32>, vector<8x384xf32> -> vector<8x384xf32>
    %c0_3 = arith.constant 0 : index
    %c0_4 = arith.constant 0 : index
    %3 = vector.load %arg3[%c0_3, %c0_4] : memref<8x384xf32, #tpu.memory_space<vmem>>, vector<8x384xf32>
    tpu.vector_store %arg3[%c0_3, %c0_4], %2 {strides = array<i32>} : memref<8x384xf32, #tpu.memory_space<vmem>>, vector<8x384xf32>,
    return
  }
  func.func @transform_0(%arg0: i32) -> (i32, i32) {
    %c0_i32 = arith.constant 0 : i32
    %c0_i32_0 = arith.constant 0 : i32
    return %arg0, %c0_i32 : i32, i32
  }
  func.func @transform_1(%arg0: i32) -> (i32, i32) {
    %c0_i32 = arith.constant 0 : i32
    %c0_i32_0 = arith.constant 0 : i32
    %c0_i32_1 = arith.constant 0 : i32
    return %c0_i32, %c0_i32_0 : i32, i32
  }
  func.func @transform_2(%arg0: i32) -> (i32, i32) {
    %c0_i32 = arith.constant 0 : i32
    %c0_i32_0 = arith.constant 0 : i32
    return %arg0, %c0_i32 : i32, i32
  }
}

</mosaic_0001>

<llo_original>
// kernel: tpu_custom_call.1
$region0: #{tpu_custom_call.1}
  #allocation0 [shape = 'u32[]', space=smem, size = 0x4, offset = 0x4, fixed_abs, tag = 'smem constant byte address 0x4 - core index']
  #allocation1 [shape = 'u32[144,128]{1,0:T(1,128)}', space=vmem, size = 0x12000, scoped, tag = 'internal scratch']
  %s0 = inlined_call_operand.hbm [shape: f32[8,32], index: 0, kind: input, shape index: {}]
  %s1 = inlined_call_operand.hbm [shape: f32[32,384], index: 1, kind: input, shape index: {}]
  %s2 = inlined_call_operand.hbm [shape: f32[8,384], index: 2, kind: output, shape index: {}]
  %s3 = sld [smem:[#allocation0]]
  $region26: #{tpu_custom_call.1} parent=0
    _
  %s5 = ssub.s32 1, %s3
  %s6 = scalar_select 0, %s5, %s3
  $region1: #{tpu_custom_call.1} parent=0
    #allocation2 [shape = 'u8[4096]{0}', space=vmem, size = 0x1000, scoped, tag = 'input window, operand 0, single buffered']
    #allocation3 [shape = 's32[1]{0}', space=sflag, size = 0x4, scoped, tag = 'scoped memory for tpu_custom_call.1']
    #allocation4 [shape = 's32[1]{0}', space=sflag, size = 0x4, scoped, tag = 'scoped memory for tpu_custom_call.1']
    #allocation5 [shape = 'u8[49152]{0}', space=vmem, size = 0xc000, scoped, tag = 'input window, operand 1, single buffered']
    #allocation6 [shape = 's32[1]{0}', space=sflag, size = 0x4, scoped, tag = 'scoped memory for tpu_custom_call.1']
    #allocation7 [shape = 'u8[12288]{0}', space=vmem, size = 0x3000, scoped, tag = 'output window, operand 0, single buffered']
    %7 = vsyncpa [#allocation3], 0
    %8 = vsyncpa [#allocation6], 0
    %9 = vsyncpa [#allocation4], 0
    // Predicated region
    $region2: #{tpu_custom_call.1} parent=1 // pred_check
      _
    $region3: #{tpu_custom_call.1} parent=1 // pred_check_branch
      %11 = sbr.rel (0) target = $region5
    $region4: #{tpu_custom_call.1} parent=1 // pred_region
      %s13 = ssub.s32 128, 128
      %14 = vsyncadd [#allocation3], %s13
      %s16 = sshll.u32 [#allocation2], 4
      %s17 = int_to_ptr.vmem [resolvable:$true] %s16
      %19 = dma.hbm_to_vmem [thread:$0]  %s0, 128, %s17, [#allocation3]
    $region5: #{tpu_custom_call.1} parent=1 // pred_fallthru
      _
    // Predicated region
    $region6: #{tpu_custom_call.1} parent=1 // pred_check
      _
    $region7: #{tpu_custom_call.1} parent=1 // pred_check_branch
      %21 = sbr.rel (0) target = $region9
    $region8: #{tpu_custom_call.1} parent=1 // pred_region
      %s23 = ssub.s32 1536, 1536
      %24 = vsyncadd [#allocation6], %s23
      %s25 = sshll.u32 [#allocation5], 4
      %s26 = int_to_ptr.vmem [resolvable:$true] %s25
      %31 = dma.hbm_to_vmem [thread:$0]  %s1, 1536, %s26, [#allocation6], 384, 384, 24
    $region9: #{tpu_custom_call.1} parent=1 // pred_fallthru
      _
    // Predicated region
    $region10: #{tpu_custom_call.1} parent=1 // pred_check
      _
    $region11: #{tpu_custom_call.1} parent=1 // pred_check_branch
      %33 = sbr.rel (0) target = $region13
    $region12: #{tpu_custom_call.1} parent=1 // pred_region
      %34 = dma.done [#allocation3], 128
    $region13: #{tpu_custom_call.1} parent=1 // pred_fallthru
      _
    // Predicated region
    $region14: #{tpu_custom_call.1} parent=1 // pred_check
      _
    $region15: #{tpu_custom_call.1} parent=1 // pred_check_branch
      %36 = sbr.rel (0) target = $region17
    $region16: #{tpu_custom_call.1} parent=1 // pred_region
      %37 = dma.done [#allocation6], 1536
    $region17: #{tpu_custom_call.1} parent=1 // pred_fallthru
      _
    %v38 = vld [vmem:[#allocation2] sm:$0xff]
    %v39 = vld [vmem:[#allocation5] sm:$0xff]
    %v40 = vld [vmem:[#allocation5 + $0x8] sm:$0xff]
    %v41 = vld [vmem:[#allocation5 + $0x10] sm:$0xff]
    %v42 = vld [vmem:[#allocation5 + $0x18] sm:$0xff]
    %v43 = vld [vmem:[#allocation5 + $0x20] sm:$0xff]
    %v44 = vld [vmem:[#allocation5 + $0x28] sm:$0xff]
    %v45 = vld [vmem:[#allocation5 + $0x30] sm:$0xff]
    %v46 = vld [vmem:[#allocation5 + $0x38] sm:$0xff]
    %v47 = vld [vmem:[#allocation5 + $0x40] sm:$0xff]
    %v48 = vld [vmem:[#allocation5 + $0x48] sm:$0xff]
    %v49 = vld [vmem:[#allocation5 + $0x50] sm:$0xff]
    %v50 = vld [vmem:[#allocation5 + $0x58] sm:$0xff]
    %vm51 = vcmask 261120
    %v53 = vsel %vm51, %v38, 0
    %55 = vmatprep.subr.mxu0 0.0
    %56 = vmatpush1.msra.mxu0 0.0
    %57 = vmatprep.subr.mxu0 0.0
    %58 = vmatpush1.msra.mxu0 0.0
    %59 = vmatprep.subr.mxu0 0.0
    %60 = vmatpush1.msra.mxu0 0.0
    %61 = vmatprep.subr.mxu0 0.0
    %62 = vmatpush1.msra.mxu0 0.0
    %63 = vmatprep.subr.mxu0 0.0
    %64 = vmatpush1.msra.mxu0 0.0
    %65 = vmatprep.subr.mxu0 0.0
    %66 = vmatpush1.msra.mxu0 0.0
    %67 = vmatprep.subr.mxu0 0.0
    %68 = vmatpush1.msra.mxu0 0.0
    %69 = vmatprep.subr.mxu0 0.0
    %70 = vmatpush1.msra.mxu0 0.0
    %71 = vmatprep.subr.mxu0 0.0
    %72 = vmatpush1.msra.mxu0 0.0
    %73 = vmatprep.subr.mxu0 0.0
    %74 = vmatpush1.msra.mxu0 0.0
    %75 = vmatprep.subr.mxu0 0.0
    %76 = vmatpush1.msra.mxu0 0.0
    %77 = vmatprep.subr.mxu0 0.0
    %78 = vmatpush1.msra.mxu0 0.0
    %79 = vmatprep.subr.mxu0 %v49
    %80 = vmatpush1.msra.mxu0 %v48
    %81 = vmatprep.subr.mxu0 %v46
    %82 = vmatpush1.msra.mxu0 %v45
    %83 = vmatprep.subr.mxu0 %v43
    %84 = vmatpush1.msra.mxu0 %v42
    %85 = vmatprep.subr.mxu0 %v40
    %86 = vmatpush1.msra.mxu0 %v39
    %87 = vmatprep.subr.mxu0 0.0
    %88 = vmatpush2.msra.mxu0 0.0
    %89 = vmatprep.subr.mxu0 0.0
    %90 = vmatpush2.msra.mxu0 0.0
    %91 = vmatprep.subr.mxu0 0.0
    %92 = vmatpush2.msra.mxu0 0.0
    %93 = vmatprep.subr.mxu0 0.0
    %94 = vmatpush2.msra.mxu0 0.0
    %95 = vmatprep.subr.mxu0 0.0
    %96 = vmatpush2.msra.mxu0 0.0
    %97 = vmatprep.subr.mxu0 0.0
    %98 = vmatpush2.msra.mxu0 0.0
    %99 = vmatprep.subr.mxu0 0.0
    %100 = vmatpush2.msra.mxu0 0.0
    %101 = vmatprep.subr.mxu0 0.0
    %102 = vmatpush2.msra.mxu0 0.0
    %103 = vmatprep.subr.mxu0 0.0
    %104 = vmatpush2.msra.mxu0 0.0
    %105 = vmatprep.subr.mxu0 0.0
    %106 = vmatpush2.msra.mxu0 0.0
    %107 = vmatprep.subr.mxu0 0.0
    %108 = vmatpush2.msra.mxu0 0.0
    %109 = vmatprep.subr.mxu0 0.0
    %110 = vmatpush2.msra.mxu0 0.0
    %111 = vmatprep.subr.mxu0 0.0
    %112 = vmatpush2.msra.mxu0 0.0
    %113 = vmatprep.subr.mxu0 0.0
    %114 = vmatpush2.msra.mxu0 0.0
    %115 = vmatprep.subr.mxu0 0.0
    %116 = vmatpush2.msra.mxu0 0.0
    %117 = vmatprep.subr.mxu0 0.0
    %118 = vmatpush2.msra.mxu0 0.0
    %119 = vmatprep.mubr.f32.mxu0 0.0
    %120 = vmatmul.mubr.f32.gmra.mxu0 %v53
    %v121 = vpop.f32.mrf.mxu0
    %v122 = vadd.f32 0.0, %v121
    %v123 = vpop.f32.mrf.mxu0
    %v124 = vadd.f32 0.0, %v123
    %125 = vdwg.mxu0
    %126 = vmatprep.subr.mxu0 0.0
    %127 = vmatpush1.msra.mxu0 0.0
    %128 = vmatprep.subr.mxu0 0.0
    %129 = vmatpush1.msra.mxu0 0.0
    %130 = vmatprep.subr.mxu0 0.0
    %131 = vmatpush1.msra.mxu0 0.0
    %132 = vmatprep.subr.mxu0 0.0
    %133 = vmatpush1.msra.mxu0 0.0
    %134 = vmatprep.subr.mxu0 0.0
    %135 = vmatpush1.msra.mxu0 0.0
    %136 = vmatprep.subr.mxu0 0.0
    %137 = vmatpush1.msra.mxu0 0.0
    %138 = vmatprep.subr.mxu0 0.0
    %139 = vmatpush1.msra.mxu0 0.0
    %140 = vmatprep.subr.mxu0 0.0
    %141 = vmatpush1.msra.mxu0 0.0
    %142 = vmatprep.subr.mxu0 0.0
    %143 = vmatpush1.msra.mxu0 0.0
    %144 = vmatprep.subr.mxu0 0.0
    %145 = vmatpush1.msra.mxu0 0.0
    %146 = vmatprep.subr.mxu0 0.0
    %147 = vmatpush1.msra.mxu0 0.0
    %148 = vmatprep.subr.mxu0 0.0
    %149 = vmatpush1.msra.mxu0 0.0
    %150 = vmatprep.subr.mxu0 0.0
    %151 = vmatpush1.msra.mxu0 %v50
    %152 = vmatprep.subr.mxu0 0.0
    %153 = vmatpush1.msra.mxu0 %v47
    %154 = vmatprep.subr.mxu0 0.0
    %155 = vmatpush1.msra.mxu0 %v44
    %156 = vmatprep.subr.mxu0 0.0
    %157 = vmatpush1.msra.mxu0 %v41
    %158 = vmatprep.subr.mxu0 0.0
    %159 = vmatpush2.msra.mxu0 0.0
    %160 = vmatprep.subr.mxu0 0.0
    %161 = vmatpush2.msra.mxu0 0.0
    %162 = vmatprep.subr.mxu0 0.0
    %163 = vmatpush2.msra.mxu0 0.0
    %164 = vmatprep.subr.mxu0 0.0
    %165 = vmatpush2.msra.mxu0 0.0
    %166 = vmatprep.subr.mxu0 0.0
    %167 = vmatpush2.msra.mxu0 0.0
    %168 = vmatprep.subr.mxu0 0.0
    %169 = vmatpush2.msra.mxu0 0.0
    %170 = vmatprep.subr.mxu0 0.0
    %171 = vmatpush2.msra.mxu0 0.0
    %172 = vmatprep.subr.mxu0 0.0
    %173 = vmatpush2.msra.mxu0 0.0
    %174 = vmatprep.subr.mxu0 0.0
    %175 = vmatpush2.msra.mxu0 0.0
    %176 = vmatprep.subr.mxu0 0.0
    %177 = vmatpush2.msra.mxu0 0.0
    %178 = vmatprep.subr.mxu0 0.0
    %179 = vmatpush2.msra.mxu0 0.0
    %180 = vmatprep.subr.mxu0 0.0
    %181 = vmatpush2.msra.mxu0 0.0
    %182 = vmatprep.subr.mxu0 0.0
    %183 = vmatpush2.msra.mxu0 0.0
    %184 = vmatprep.subr.mxu0 0.0
    %185 = vmatpush2.msra.mxu0 0.0
    %186 = vmatprep.subr.mxu0 0.0
    %187 = vmatpush2.msra.mxu0 0.0
    %188 = vmatprep.subr.mxu0 0.0
    %189 = vmatpush2.msra.mxu0 0.0
    %190 = vmatprep.mubr.f32.mxu0 0.0
    %191 = vmatmul.mubr.f32.gmra.mxu0 %v53
    %v192 = vpop.f32.mrf.mxu0
    %v193 = vadd.f32 0.0, %v192
    %v194 = vpop.f32.mrf.mxu0
    %195 = vdwg.mxu0
    %196 = vst [vmem:[#allocation7] sm:$0xff] %v122
    %197 = vst [vmem:[#allocation7 + $0x8] sm:$0xff] %v124
    %198 = vst [vmem:[#allocation7 + $0x10] sm:$0xff] %v193
    // Predicated region
    $region18: #{tpu_custom_call.1} parent=1 // pred_check
      _
    $region19: #{tpu_custom_call.1} parent=1 // pred_check_branch
      %200 = sbr.rel (0) target = $region21
    $region20: #{tpu_custom_call.1} parent=1 // pred_region
      %s202 = ssub.s32 384, 384
      %203 = vsyncadd [#allocation4], %s202
      %s205 = sshll.u32 [#allocation7], 4
      %s206 = int_to_ptr.vmem [resolvable:$true] %s205
      %208 = dma.vmem_to_hbm [thread:$0]  %s206, 384, %s2, [#allocation4]
    $region21: #{tpu_custom_call.1} parent=1 // pred_fallthru
      _
    // Predicated region
    $region22: #{tpu_custom_call.1} parent=1 // pred_check
      _
    $region23: #{tpu_custom_call.1} parent=1 // pred_check_branch
      %210 = sbr.rel (0) target = $region25
    $region24: #{tpu_custom_call.1} parent=1 // pred_region
      %211 = dma.done [#allocation4], 384
    $region25: #{tpu_custom_call.1} parent=1 // pred_fallthru
      _
    %212 = vsyncpa [#allocation3], 1
    %213 = vsyncpa [#allocation6], 1
    %214 = vsyncpa [#allocation4], 1

</llo_original>
